<compile_context>
chip_gen: v6e
topology: v6e:2x2x1
jax: 0.10.0
libtpu: 0.0.40
codegen_flags: <defaults>
</compile_context>

<pallas_src>
import functools

import jax
import jax.numpy as jnp
from jax import lax
from jax.experimental import pallas as pl
from jax.experimental.pallas import tpu as pltpu


def _round_up(x, m):
    return ((x + m - 1) // m) * m


def _vmem_capacity_bytes():
    """Physical VMEM of the current TPU generation (conservative fallback)."""
    try:
        info = pltpu.get_tpu_info()
        for attr in ("vmem_capacity_bytes", "vmem_bytes"):
            v = getattr(info, attr, None)
            if v:
                return int(v)
    except Exception:
        pass
    return 64 * 1024 * 1024  # v7x floor; safe on every generation


def _classify_kernel(x_ref, k_ref, o_ref, acc_ref, *, inv_hw, tail_len):
    # x_ref  : (tn, C1, t_hw)  input tile, spatial on the lane axis
    # k_ref  : (C2, C1)        1x1 conv weight, native dtype (no host transpose)
    # o_ref  : (tn, C2)        flattened classifier output
    # acc_ref: (tn, C1) f32    running per-channel spatial sums
    h = pl.program_id(1)
    last = pl.num_programs(1) - 1

    @pl.when(h == 0)
    def _init():
        acc_ref[...] = jnp.zeros_like(acc_ref)

    if tail_len is None:
        # HW is a multiple of t_hw: every tile is fully valid.
        acc_ref[...] += jnp.sum(x_ref[...], axis=-1, dtype=jnp.float32)
    else:
        @pl.when(h != last)
        def _full():
            acc_ref[...] += jnp.sum(x_ref[...], axis=-1, dtype=jnp.float32)

        @pl.when(h == last)
        def _tail():
            # Mask the overhanging lanes of the last tile; zeros are exact for
            # a sum and inv_hw uses the true HW, so the mean stays unbiased.
            lane = lax.broadcasted_iota(jnp.int32, (1, 1, x_ref.shape[-1]), 2)
            x = jnp.where(lane < tail_len, x_ref[...], jnp.zeros((), x_ref.dtype))
            acc_ref[...] += jnp.sum(x, axis=-1, dtype=jnp.float32)

    @pl.when(h == last)
    def _finalize():
        pooled = acc_ref[...] * inv_hw                       # (tn, C1) global avg pool
        k = k_ref[...].astype(jnp.float32)                   # tiny; DMA stays native dtype
        out = lax.dot_general(
            pooled, k,
            dimension_numbers=(((1,), (1,)), ((), ())),      # contract C1 with C1
            preferred_element_type=jnp.float32,
        )                                                    # (tn, C2)
        o_ref[...] = out.astype(o_ref.dtype)                 # 1x1 conv + flatten


def classify_forward(x, conv_w, *, vmem_tile_bytes=None, vmem_limit_bytes=None):
    """x: (N, C1, H, W) [or list of same-spatial tensors], conv_w: (C2, C1, 1, 1)."""
    if isinstance(x, (list, tuple)):
        # TODO(synk): PyTorch Classify pools each tensor *before* concatenating, so
        # mixed spatial sizes are legal; only equal-spatial lists are fused here.
        x = jnp.concatenate(list(x), axis=1)

    N, C1, H, W = x.shape
    C2, kc1, kh, kw = conv_w.shape
    assert kh == 1 and kw == 1
    assert kc1 == C1  # TODO(synk): grouped (g>1) 1x1 conv not implemented
    HW = H * W
    itemsize = jnp.dtype(x.dtype).itemsize

    # ---- per-generation VMEM budget -------------------------------------
    vmem_cap = _vmem_capacity_bytes()
    if vmem_limit_bytes is None:
        # Leave headroom below physical VMEM: ~48 MiB on v7x (64 MiB phys),
        # ~96 MiB on v5e/v6e (128 MiB phys).
        vmem_limit_bytes = min(vmem_cap * 3 // 4, 100 * 1024 * 1024)
    if vmem_tile_bytes is None:
        # Double-buffered input tile + weight + acc + out must fit with margin.
        vmem_tile_bytes = max(2 * 1024 * 1024, vmem_limit_bytes // 4)

    # ---- tiling ----------------------------------------------------------
    # Batch tile: 8 sublanes when divisible, else the full batch (keeps the
    # (tn, C2) output block legal without padding).
    tn = 8 if (N % 8 == 0) else N

    # Spatial (lane) tile: 128-aligned, targeted at 512-2048 lanes, capped by
    # the VMEM tile budget and by HW rounded up to 128.  Ragged tails are
    # masked in-kernel, so t_hw never has to divide HW.
    if HW <= 128:
        t_hw = HW
    else:
        budget_lanes = vmem_tile_bytes // max(1, tn * C1 * itemsize)
        t_hw = min(2048, (budget_lanes // 128) * 128)
        t_hw = max(128, t_hw)
        t_hw = min(t_hw, _round_up(HW, 128))

    hw_steps = (HW + t_hw - 1) // t_hw
    tail = HW % t_hw
    tail_len = None if tail == 0 else tail

    grid = (N // tn, hw_steps)

    # Weight stays (C2, C1) in its native dtype: no per-call transpose/upcast.
    k_mat = conv_w.reshape(C2, C1)

    cost = pl.CostEstimate(
        flops=N * C1 * HW + 2 * N * C1 * C2,
        transcendentals=0,
        bytes_accessed=N * C1 * HW * itemsize
        + C1 * C2 * jnp.dtype(conv_w.dtype).itemsize
        + N * C2 * itemsize,
    )

    xf = x.reshape(N, C1, HW)  # free reshape; spatial lands on lanes

    out = pl.pallas_call(
        functools.partial(_classify_kernel, inv_hw=float(1.0 / HW), tail_len=tail_len),
        out_shape=jax.ShapeDtypeStruct((N, C2), x.dtype),
        grid_spec=pltpu.PrefetchScalarGridSpec(
            num_scalar_prefetch=0,
            grid=grid,
            in_specs=[
                pl.BlockSpec((tn, C1, t_hw), lambda b, h: (b, 0, h)),
                pl.BlockSpec((C2, C1), lambda b, h: (0, 0)),
            ],
            out_specs=pl.BlockSpec((tn, C2), lambda b, h: (b, 0)),
            scratch_shapes=[pltpu.VMEM((tn, C1), jnp.float32)],
        ),
        compiler_params=pltpu.CompilerParams(
            dimension_semantics=("parallel", "arbitrary"),
            vmem_limit_bytes=int(vmem_limit_bytes),
        ),
        cost_estimate=cost,
    )(xf, k_mat)

    # TODO(synk): on v7x with N//tn < 2 the second TensorCore idles; a C1-group
    # split with a wrapper-side partial-sum combine would recover ~2x there.
    return out  # (N, C2) — already flat, matches Flatten()


def _reference(x, conv_w):
    pooled = jnp.mean(x.astype(jnp.float32), axis=(2, 3))       # AdaptiveAvgPool2d(1)
    k = conv_w.reshape(conv_w.shape[0], conv_w.shape[1]).astype(jnp.float32)
    return (pooled @ k.T).astype(x.dtype)                       # 1x1 conv + flatten


if __name__ == "__main__":
    key = jax.random.PRNGKey(0)
    N, C1, H, W = 2, 4, 16, 16
    C2 = 8

    kx, kw_ = jax.random.split(key, 2)
    x = jax.random.normal(kx, (N, C1, H, W), dtype=jnp.float32)

    fan_in = C1  # kernel_size = 1
    bound = 1.0 / (fan_in ** 0.5)
    conv_w = jax.random.uniform(kw_, (C2, C1, 1, 1), jnp.float32, -bound, bound)

    out = classify_forward(x, conv_w)
    out = jax.block_until_ready(out)

    ref = _reference(x, conv_w)
    assert out.shape == (N, C2)
    assert out.dtype == x.dtype
    assert jnp.allclose(out, ref, atol=1e-5, rtol=1e-5), "mismatch vs reference"

    print("KERNEL_OK")
</pallas_src>

<mosaic_0001>
module attributes {stable_mosaic.version = 11 : i64} {
  func.func @_classify_kernel(%arg0: i32, %arg1: i32, %arg2: memref<2x4x256xf32, #tpu.memory_space<vmem>>, %arg3: memref<8x4xf32, #tpu.memory_space<vmem>>, %arg4: memref<2x8xf32, #tpu.memory_space<vmem>>, %arg5: memref<2x4xf32, #tpu.memory_space<vmem>>) attributes {dimension_semantics = [#tpu.dimension_semantics<parallel>, #tpu.dimension_semantics<arbitrary>], iteration_bounds = array<i64: 1, 1>, scalar_prefetch = 0 : i64, scratch_operands = 1 : i64, tpu.core_type = #tpu.core_type<tc>, window_params = [{transform_indices = @transform_0, window_bounds = array<i64: 2, 4, 256>}, {pipeline_mode = #tpu.pipeline_mode<synchronous>, transform_indices = @transform_1, window_bounds = array<i64: 8, 4>}, {transform_indices = @transform_2, window_bounds = array<i64: 2, 8>}]} {
    %c0_i32 = arith.constant 0 : i32
    %0 = arith.cmpi eq, %arg1, %c0_i32 : i32
    %1 = arith.extui %0 : i1 to i32
    %c0_i32_0 = arith.constant 0 : i32
    %2 = arith.cmpi ne, %1, %c0_i32_0 : i32
    scf.if %2 {
      %cst_9 = arith.constant 0.000000e+00 : f32
      %11 = vector.broadcast %cst_9 : f32 to vector<2x4xf32>
      %c0_10 = arith.constant 0 : index
      %c0_11 = arith.constant 0 : index
      %12 = vector.load %arg5[%c0_10, %c0_11] : memref<2x4xf32, #tpu.memory_space<vmem>>, vector<2x4xf32>
      tpu.vector_store %arg5[%c0_10, %c0_11], %11 {strides = array<i32>} : memref<2x4xf32, #tpu.memory_space<vmem>>, vector<2x4xf32>,
    } else {
    }
    %c0 = arith.constant 0 : index
    %c0_1 = arith.constant 0 : index
    %3 = vector.load %arg5[%c0, %c0_1] : memref<2x4xf32, #tpu.memory_space<vmem>>, vector<2x4xf32>
    %c0_2 = arith.constant 0 : index
    %c0_3 = arith.constant 0 : index
    %c0_4 = arith.constant 0 : index
    %4 = vector.load %arg2[%c0_2, %c0_3, %c0_4] : memref<2x4x256xf32, #tpu.memory_space<vmem>>, vector<2x4x256xf32>
    %cst = arith.constant dense<0.000000e+00> : vector<2x4xf32>
    %5 = vector.multi_reduction <add>, %4, %cst [2] : vector<2x4x256xf32> to vector<2x4xf32>
    %6 = arith.addf %3, %5 : vector<2x4xf32>
    %c0_5 = arith.constant 0 : index
    %c0_6 = arith.constant 0 : index
    %7 = vector.load %arg5[%c0_5, %c0_6] : memref<2x4xf32, #tpu.memory_space<vmem>>, vector<2x4xf32>
    tpu.vector_store %arg5[%c0_5, %c0_6], %6 {strides = array<i32>} : memref<2x4xf32, #tpu.memory_space<vmem>>, vector<2x4xf32>,
    %c0_i32_7 = arith.constant 0 : i32
    %8 = arith.cmpi eq, %arg1, %c0_i32_7 : i32
    %9 = arith.extui %8 : i1 to i32
    %c0_i32_8 = arith.constant 0 : i32
    %10 = arith.cmpi ne, %9, %c0_i32_8 : i32
    scf.if %10 {
      %c0_9 = arith.constant 0 : index
      %c0_10 = arith.constant 0 : index
      %11 = vector.load %arg5[%c0_9, %c0_10] : memref<2x4xf32, #tpu.memory_space<vmem>>, vector<2x4xf32>
      %cst_11 = arith.constant 3.906250e-03 : f32
      %12 = vector.broadcast %cst_11 : f32 to vector<2x4xf32>
      %13 = arith.mulf %11, %12 : vector<2x4xf32>
      %c0_12 = arith.constant 0 : index
      %c0_13 = arith.constant 0 : index
      %14 = vector.load %arg3[%c0_12, %c0_13] : memref<8x4xf32, #tpu.memory_space<vmem>>, vector<8x4xf32>
      %cst_14 = arith.constant dense<0.000000e+00> : vector<2x8xf32>
      %15 = tpu.matmul %13, %14, %cst_14 {dimension_numbers = #tpu.dot_dimension_numbers<[1], [1], [0], [0], [0, 0, 1, 0], [], []>} : vector<2x4xf32>, vector<8x4xf32>, vector<2x8xf32> -> vector<2x8xf32>
      %c0_15 = arith.constant 0 : index
      %c0_16 = arith.constant 0 : index
      %16 = vector.load %arg4[%c0_15, %c0_16] : memref<2x8xf32, #tpu.memory_space<vmem>>, vector<2x8xf32>
      tpu.vector_store %arg4[%c0_15, %c0_16], %15 {strides = array<i32>} : memref<2x8xf32, #tpu.memory_space<vmem>>, vector<2x8xf32>,
    } else {
    }
    return
  }
  func.func @transform_0(%arg0: i32, %arg1: i32) -> (i32, i32, i32) {
    %c0_i32 = arith.constant 0 : i32
    %c0_i32_0 = arith.constant 0 : i32
    return %arg0, %c0_i32, %arg1 : i32, i32, i32
  }
  func.func @transform_1(%arg0: i32, %arg1: i32) -> (i32, i32) {
    %c0_i32 = arith.constant 0 : i32
    %c0_i32_0 = arith.constant 0 : i32
    %c0_i32_1 = arith.constant 0 : i32
    return %c0_i32, %c0_i32_0 : i32, i32
  }
  func.func @transform_2(%arg0: i32, %arg1: i32) -> (i32, i32) {
    %c0_i32 = arith.constant 0 : i32
    %c0_i32_0 = arith.constant 0 : i32
    return %arg0, %c0_i32 : i32, i32
  }
}

</mosaic_0001>

<llo_original>
// kernel: tpu_custom_call.1
$region0: #{tpu_custom_call.1}
  #allocation0 [shape = 'u32[]', space=smem, size = 0x4, offset = 0x4, fixed_abs, tag = 'smem constant byte address 0x4 - core index']
  #allocation1 [shape = 'u32[144,128]{1,0:T(1,128)}', space=vmem, size = 0x12000, scoped, tag = 'internal scratch']
  #allocation2 [shape = 'f32[2,4]{1,0:T(2,128)}', space=vmem, size = 0x400, scoped, tag = 'scratch operand']
  %s0 = inlined_call_operand.hbm [shape: f32[2,4,256], index: 0, kind: input, shape index: {}]
  %s1 = inlined_call_operand.vmem [shape: f32[8,4], index: 1, kind: input, shape index: {}]
  %s2 = inlined_call_operand.hbm [shape: f32[2,8], index: 2, kind: output, shape index: {}]
  %s3 = sld [smem:[#allocation0]]
  $region30: #{tpu_custom_call.1} parent=0
    _
  %s5 = ssub.s32 1, %s3
  %s6 = scalar_select 0, %s5, %s3
  $region1: #{tpu_custom_call.1} parent=0
    #allocation3 [shape = 'u8[8192]{0}', space=vmem, size = 0x2000, scoped, tag = 'input window, operand 0, single buffered']
    #allocation4 [shape = 's32[1]{0}', space=sflag, size = 0x4, scoped, tag = 'scoped memory for tpu_custom_call.1']
    #allocation5 [shape = 's32[1]{0}', space=sflag, size = 0x4, scoped, tag = 'scoped memory for tpu_custom_call.1']
    #allocation6 [shape = 'u8[1024]{0}', space=vmem, size = 0x400, scoped, tag = 'output window, operand 0, single buffered']
    %7 = vsyncpa [#allocation4], 0
    %8 = vsyncpa [#allocation5], 0
    // Predicated region
    $region2: #{tpu_custom_call.1} parent=1 // pred_check
      _
    $region3: #{tpu_custom_call.1} parent=1 // pred_check_branch
      %10 = sbr.rel (0) target = $region5
    $region4: #{tpu_custom_call.1} parent=1 // pred_region
      %s12 = ssub.s32 256, 256
      %13 = vsyncadd [#allocation4], %s12
      %s14 = sshll.u32 [#allocation3], 4
      %s15 = int_to_ptr.vmem [resolvable:$true] %s14
      %20 = dma.hbm_to_vmem [thread:$0]  %s0, 256, %s15, [#allocation4], 128, 128, 8
    $region5: #{tpu_custom_call.1} parent=1 // pred_fallthru
      _
    // Predicated region
    $region6: #{tpu_custom_call.1} parent=1 // pred_check
      _
    $region7: #{tpu_custom_call.1} parent=1 // pred_check_branch
      %22 = sbr.rel (0) target = $region9
    $region8: #{tpu_custom_call.1} parent=1 // pred_region
      _
    $region9: #{tpu_custom_call.1} parent=1 // pred_fallthru
      _
    // Predicated region
    $region10: #{tpu_custom_call.1} parent=1 // pred_check
      _
    $region11: #{tpu_custom_call.1} parent=1 // pred_check_branch
      %24 = sbr.rel (0) target = $region13
    $region12: #{tpu_custom_call.1} parent=1 // pred_region
      %25 = dma.done [#allocation4], 256
    $region13: #{tpu_custom_call.1} parent=1 // pred_fallthru
      _
    %p26 = scmp.eq.s32.totalorder 0, 0
    // Predicated region
    $region14: #{tpu_custom_call.1} parent=1 // pred_check
      %p27 = pneg %p26
    $region15: #{tpu_custom_call.1} parent=1 // pred_check_branch
      %29 = sbr.rel (%p27) target = $region17
    $region16: #{tpu_custom_call.1} parent=1 // pred_region
      %vm30 = vcmask 25600
      %31 = vst.msk [vmem:[#allocation2] sm:$0x3] %vm30, 0.0
    $region17: #{tpu_custom_call.1} parent=1 // pred_fallthru
      _
    %v32 = vld [vmem:[#allocation2] sm:$0x3]
    %v33 = vld [vmem:[#allocation3] sm:$0xff]
    %v34 = vld [vmem:[#allocation3 + $0x8] sm:$0xff]
    %v37 = vcombine.high %v33, %v33
    %v38 = vcombine.high %v34, %v34
    %vm41 = vcmask 1043456
    %v42 = vsel %vm41, %v33, 0.0
    %v43 = vsel %vm41, %v37, 0.0
    %v44 = vadd.f32 %v42, %v43
    %45 = vadd.xlane.f32.xlu0 %v44
    %v46 = vpop.xlane.xlu0 %45
    %v47 = vsel %vm41, %v34, 0.0
    %v48 = vsel %vm41, %v38, 0.0
    %v49 = vadd.f32 %v47, %v48
    %50 = vadd.xlane.f32.xlu0 %v49
    %v51 = vpop.xlane.xlu0 %50
    %v54 = vlaneseq
    %v55 = vand.u32 %v54, 127
    %v56 = vlaneseq
    %v57 = vshrl.u32 %v56, 7
    %v58 = vsub.s32 %v55, %v57
    %v59 = vrot.slane %v46, %v58
    %v60 = vlaneseq
    %v61 = vshrl.u32 %v60, 7
    %v62 = vsub.s32 %v55, %v61
    %v63 = vrot.slane %v51, %v62
    %vm64 = vcmask 1041409
    %v65 = vsel %vm64, %v63, %v59
    %v67 = vadd.f32 %v32, %v65
    %vm68 = vcmask 25600
    %69 = vst.msk [vmem:[#allocation2] sm:$0x3] %vm68, %v67
    // Predicated region
    $region18: #{tpu_custom_call.1} parent=1 // pred_check
      %p70 = pneg %p26
    $region19: #{tpu_custom_call.1} parent=1 // pred_check_branch
      %72 = sbr.rel (%p70) target = $region21
    $region20: #{tpu_custom_call.1} parent=1 // pred_region
      %v73 = vld [vmem:[#allocation2] sm:$0x3]
      %v74 = vmul.f32 %v73, 0.00390625
      %v75 = vld [vmem:[%s1] sm:$0xff]
      %vm76 = vcmask 31744
      %v78 = vsel %vm76, %v74, 0
      %v81 = vsel %vm76, %v75, 0
      %83 = vmatprep.subr.mxu0 0.0
      %84 = vmatpush1.xpose.msra.mxu0 0.0
      %85 = vmatprep.subr.mxu0 0.0
      %86 = vmatpush1.xpose.msra.mxu0 0.0
      %87 = vmatprep.subr.mxu0 0.0
      %88 = vmatpush1.xpose.msra.mxu0 0.0
      %89 = vmatprep.subr.mxu0 0.0
      %90 = vmatpush1.xpose.msra.mxu0 0.0
      %91 = vmatprep.subr.mxu0 0.0
      %92 = vmatpush1.xpose.msra.mxu0 0.0
      %93 = vmatprep.subr.mxu0 0.0
      %94 = vmatpush1.xpose.msra.mxu0 0.0
      %95 = vmatprep.subr.mxu0 0.0
      %96 = vmatpush1.xpose.msra.mxu0 0.0
      %97 = vmatprep.subr.mxu0 0.0
      %98 = vmatpush1.xpose.msra.mxu0 0.0
      %99 = vmatprep.subr.mxu0 0.0
      %100 = vmatpush1.xpose.msra.mxu0 0.0
      %101 = vmatprep.subr.mxu0 0.0
      %102 = vmatpush1.xpose.msra.mxu0 0.0
      %103 = vmatprep.subr.mxu0 0.0
      %104 = vmatpush1.xpose.msra.mxu0 0.0
      %105 = vmatprep.subr.mxu0 0.0
      %106 = vmatpush1.xpose.msra.mxu0 0.0
      %107 = vmatprep.subr.mxu0 0.0
      %108 = vmatpush1.xpose.msra.mxu0 0.0
      %109 = vmatprep.subr.mxu0 0.0
      %110 = vmatpush1.xpose.msra.mxu0 0.0
      %111 = vmatprep.subr.mxu0 0.0
      %112 = vmatpush1.xpose.msra.mxu0 0.0
      %113 = vmatprep.subr.mxu0 0.0
      %114 = vmatpush1.xpose.msra.mxu0 %v81
      %115 = vmatprep.subr.mxu0 0.0
      %116 = vmatpush2.xpose.msra.mxu0 0.0
      %117 = vmatprep.subr.mxu0 0.0
      %118 = vmatpush2.xpose.msra.mxu0 0.0
      %119 = vmatprep.subr.mxu0 0.0
      %120 = vmatpush2.xpose.msra.mxu0 0.0
      %121 = vmatprep.subr.mxu0 0.0
      %122 = vmatpush2.xpose.msra.mxu0 0.0
      %123 = vmatprep.subr.mxu0 0.0
      %124 = vmatpush2.xpose.msra.mxu0 0.0
      %125 = vmatprep.subr.mxu0 0.0
      %126 = vmatpush2.xpose.msra.mxu0 0.0
      %127 = vmatprep.subr.mxu0 0.0
      %128 = vmatpush2.xpose.msra.mxu0 0.0
      %129 = vmatprep.subr.mxu0 0.0
      %130 = vmatpush2.xpose.msra.mxu0 0.0
      %131 = vmatprep.subr.mxu0 0.0
      %132 = vmatpush2.xpose.msra.mxu0 0.0
      %133 = vmatprep.subr.mxu0 0.0
      %134 = vmatpush2.xpose.msra.mxu0 0.0
      %135 = vmatprep.subr.mxu0 0.0
      %136 = vmatpush2.xpose.msra.mxu0 0.0
      %137 = vmatprep.subr.mxu0 0.0
      %138 = vmatpush2.xpose.msra.mxu0 0.0
      %139 = vmatprep.subr.mxu0 0.0
      %140 = vmatpush2.xpose.msra.mxu0 0.0
      %141 = vmatprep.subr.mxu0 0.0
      %142 = vmatpush2.xpose.msra.mxu0 0.0
      %143 = vmatprep.subr.mxu0 0.0
      %144 = vmatpush2.xpose.msra.mxu0 0.0
      %145 = vmatprep.subr.mxu0 0.0
      %146 = vmatpush2.xpose.msra.mxu0 0.0
      %147 = vmatprep.mubr.f32.mxu0 0.0
      %148 = vmatmul.mubr.f32.gmra.mxu0 %v78
      %v149 = vpop.f32.mrf.mxu0
      %v150 = vadd.f32 0.0, %v149
      %v151 = vpop.f32.mrf.mxu0
      %152 = vdwg.mxu0
      %vm153 = vcmask 58368
      %154 = vst.msk [vmem:[#allocation6] sm:$0x3] %vm153, %v150
    $region21: #{tpu_custom_call.1} parent=1 // pred_fallthru
      _
    // Predicated region
    $region22: #{tpu_custom_call.1} parent=1 // pred_check
      _
    $region23: #{tpu_custom_call.1} parent=1 // pred_check_branch
      %156 = sbr.rel (0) target = $region25
    $region24: #{tpu_custom_call.1} parent=1 // pred_region
      %s158 = ssub.s32 32, 32
      %159 = vsyncadd [#allocation5], %s158
      %s161 = sshll.u32 [#allocation6], 4
      %s162 = int_to_ptr.vmem [resolvable:$true] %s161
      %164 = dma.vmem_to_hbm [thread:$0]  %s162, 32, %s2, [#allocation5]
    $region25: #{tpu_custom_call.1} parent=1 // pred_fallthru
      _
    // Predicated region
    $region26: #{tpu_custom_call.1} parent=1 // pred_check
      _
    $region27: #{tpu_custom_call.1} parent=1 // pred_check_branch
      %166 = sbr.rel (0) target = $region29
    $region28: #{tpu_custom_call.1} parent=1 // pred_region
      %167 = dma.done [#allocation5], 32
    $region29: #{tpu_custom_call.1} parent=1 // pred_fallthru
      _
    %168 = vsyncpa [#allocation4], 1
    %169 = vsyncpa [#allocation5], 1

</llo_original>
